<compile_context>
chip_gen: v5e
topology: v5e:2x2
jax: 0.10.0
libtpu: 0.0.40
codegen_flags: <defaults>
</compile_context>

<pallas_src>
import functools

import jax
import jax.numpy as jnp
from jax.experimental import pallas as pl
from jax.experimental.pallas import tpu as pltpu


_LANE = 128       # TPU lane width: hidden dim is padded to this once at prep time
_MAX_TB = 2048    # batch-tile rows; big tiles minimize ~0.35 us/step grid overhead


def _round_up(n: int, m: int) -> int:
    return ((n + m - 1) // m) * m


def ddpg_kernel(x_ref, w1_ref, b1_ref, w2_ref, b2_ref, w3_ref, b3_ref, o_ref):
    """One batch tile of Linear->Tanh->Linear->Tanh->Linear->Tanh, all in VMEM."""
    mm_dtype = w1_ref.dtype                      # matmul operand dtype (f32 or bf16)
    x = x_ref[...].astype(mm_dtype)              # in-kernel cast (free VALU slot)

    # Layer 1: Linear + Tanh (MXU accumulates f32; bias-add + tanh in f32 on VPU/EUP)
    h = jnp.tanh(
        jnp.dot(x, w1_ref[...], preferred_element_type=jnp.float32) + b1_ref[...]
    )
    # Layer 2: Linear + Tanh (hidden padded to 128 lanes -> lane-dense vregs/MXU)
    h = jnp.tanh(
        jnp.dot(h.astype(mm_dtype), w2_ref[...], preferred_element_type=jnp.float32)
        + b2_ref[...]
    )
    # Head: Linear + Tanh, stored unpadded as (tb, A).
    o = jnp.tanh(
        jnp.dot(h.astype(mm_dtype), w3_ref[...], preferred_element_type=jnp.float32)
        + b3_ref[...]
    )
    o_ref[...] = o.astype(o_ref.dtype)


def prepare_params(params, matmul_dtype=jnp.bfloat16):
    """One-time prep: cast weights for the MXU and zero-pad hidden dim to 128 lanes.

    Zero padding is exact: the padded hidden columns are tanh(0) = 0 and the
    matching zero rows of w2/w3 contribute nothing.  Keep the result around and
    reuse it across forward calls (weights are a single resident DMA under the
    grid; no per-call padding/casting HLO ops).
    """
    w1, b1 = params["w1"], params["b1"]
    w2, b2 = params["w2"], params["b2"]
    w3, b3 = params["w3"], params["b3"]
    H = w1.shape[1]
    Hp = _round_up(H, _LANE)
    dh = Hp - H
    w1p = jnp.pad(w1, ((0, 0), (0, dh)))
    b1p = jnp.pad(b1, ((0, 0), (0, dh)))
    w2p = jnp.pad(w2, ((0, dh), (0, dh)))
    b2p = jnp.pad(b2, ((0, 0), (0, dh)))
    w3p = jnp.pad(w3, ((0, dh), (0, 0)))
    return dict(
        w1=w1p.astype(matmul_dtype), b1=b1p.astype(jnp.float32),
        w2=w2p.astype(matmul_dtype), b2=b2p.astype(jnp.float32),
        w3=w3p.astype(matmul_dtype), b3=b3.astype(jnp.float32),
    )


@functools.partial(jax.jit, static_argnames=("max_batch_tile",))
def ddpg_forward(x, prepped, *, max_batch_tile=_MAX_TB):
    """x: (B, obs_dim) f32; prepped: output of prepare_params()."""
    w1, b1 = prepped["w1"], prepped["b1"]
    w2, b2 = prepped["w2"], prepped["b2"]
    w3, b3 = prepped["w3"], prepped["b3"]

    B, obs = x.shape
    Hp = w1.shape[1]
    A = w3.shape[1]

    # Single tile for small/medium batches (grid=(1,)); for larger batches a
    # ragged pl.cdiv grid -- Pallas masks the OOB tail block on writeback, so no
    # wrapper-side pad or slice is ever emitted.
    if B <= max_batch_tile:
        tb = B
    else:
        tb = _round_up(max_batch_tile, 8)
    grid = (pl.cdiv(B, tb),)

    resident = lambda i: (0, 0)                  # weights/biases stay put across steps

    weight_bytes = sum(
        int(v.size) * v.dtype.itemsize for v in (w1, b1, w2, b2, w3, b3)
    )
    cost = pl.CostEstimate(
        flops=2 * B * (obs * Hp + Hp * Hp + Hp * A),
        transcendentals=B * (2 * Hp + A),
        bytes_accessed=int(x.size) * x.dtype.itemsize + B * A * 4 + weight_bytes,
    )

    return pl.pallas_call(
        ddpg_kernel,
        out_shape=jax.ShapeDtypeStruct((B, A), jnp.float32),
        grid=grid,
        in_specs=[
            pl.BlockSpec((tb, obs), lambda i: (i, 0)),     # x tile (double-buffered)
            pl.BlockSpec((obs, Hp), resident),             # w1 (hidden lane-padded)
            pl.BlockSpec((1, Hp), resident),               # b1
            pl.BlockSpec((Hp, Hp), resident),              # w2
            pl.BlockSpec((1, Hp), resident),               # b2
            pl.BlockSpec((Hp, A), resident),               # w3 (unpadded head cols)
            pl.BlockSpec((1, A), resident),                # b3
        ],
        out_specs=pl.BlockSpec((tb, A), lambda i: (i, 0)),
        compiler_params=pltpu.CompilerParams(
            dimension_semantics=("parallel",),
        ),
        cost_estimate=cost,
    )(x, w1, b1, w2, b2, w3, b3)


def init_linear(key, fan_in, fan_out):
    """PyTorch nn.Linear default init: U(-1/sqrt(fan_in), 1/sqrt(fan_in))."""
    kw, kb = jax.random.split(key)
    bound = 1.0 / jnp.sqrt(jnp.float32(fan_in))
    w = jax.random.uniform(kw, (fan_in, fan_out), jnp.float32, -bound, bound)
    b = jax.random.uniform(kb, (1, fan_out), jnp.float32, -bound, bound)
    return w, b


def init_ddpg_params(key, observation_dim, num_actions, hidden_size=64):
    k1, k2, k3 = jax.random.split(key, 3)
    w1, b1 = init_linear(k1, observation_dim, hidden_size)
    w2, b2 = init_linear(k2, hidden_size, hidden_size)
    w3, b3 = init_linear(k3, hidden_size, num_actions)
    return dict(w1=w1, b1=b1, w2=w2, b2=b2, w3=w3, b3=b3)


def ddpg_reference(x, p, matmul_dtype=None):
    """Pure-JAX reference (unpadded weights), optionally mirroring bf16 operands."""
    def lin(h, w, b):
        if matmul_dtype is not None:
            h = h.astype(matmul_dtype)
            w = w.astype(matmul_dtype)
        return jnp.dot(h, w, preferred_element_type=jnp.float32) + b
    h = jnp.tanh(lin(x, p["w1"], p["b1"]))
    h = jnp.tanh(lin(h, p["w2"], p["b2"]))
    return jnp.tanh(lin(h, p["w3"], p["b3"]))


if __name__ == "__main__":
    observation_dim = 8
    num_actions = 4
    hidden_size = 64

    key = jax.random.PRNGKey(0)
    kx, kp, kx2 = jax.random.split(key, 3)
    params = init_ddpg_params(kp, observation_dim, num_actions, hidden_size)

    # --- small batch, full-f32 matmul path: single tile, exact vs reference --
    x_small = jax.random.normal(kx, (2, observation_dim), jnp.float32)
    pp_f32 = prepare_params(params, matmul_dtype=jnp.float32)
    out = jax.block_until_ready(ddpg_forward(x_small, pp_f32))
    ref = ddpg_reference(x_small, params)
    assert out.shape == (2, num_actions), out.shape
    assert jnp.allclose(out, ref, atol=1e-5, rtol=1e-5), (out, ref)
    assert bool(jnp.all(jnp.abs(out) <= 1.0))

    # --- batched bf16 path: single big tile (grid=(1,)), no wrapper HLO ops ---
    x_big = jax.random.normal(kx2, (1000, observation_dim), jnp.float32)
    pp_bf16 = prepare_params(params, matmul_dtype=jnp.bfloat16)
    out_big = jax.block_until_ready(ddpg_forward(x_big, pp_bf16))
    ref_big_bf16 = ddpg_reference(x_big, params, matmul_dtype=jnp.bfloat16)
    ref_big_f32 = ddpg_reference(x_big, params)
    assert out_big.shape == (1000, num_actions), out_big.shape
    assert jnp.allclose(out_big, ref_big_bf16, atol=2e-3, rtol=2e-3)
    # documented deviation of the bf16-operand path from the full-f32 PyTorch math:
    assert jnp.allclose(out_big, ref_big_f32, atol=5e-2, rtol=5e-2)
    assert bool(jnp.all(jnp.abs(out_big) <= 1.0))

    # --- same data through a multi-step ragged grid (1000 = 3*256 + 232):
    #     exercises Pallas' OOB tail-block write masking; rows are independent so
    #     the result must match the single-tile run.
    out_tiled = jax.block_until_ready(
        ddpg_forward(x_big, pp_bf16, max_batch_tile=256)
    )
    assert out_tiled.shape == (1000, num_actions)
    assert jnp.allclose(out_tiled, out_big, atol=1e-6, rtol=0.0)

    print("KERNEL_OK")
</pallas_src>

<mosaic_0001>
module attributes {stable_mosaic.version = 11 : i64} {
  func.func @ddpg_kernel(%arg0: i32, %arg1: memref<2x8xf32, #tpu.memory_space<vmem>>, %arg2: memref<8x128xf32, #tpu.memory_space<vmem>>, %arg3: memref<1x128xf32, #tpu.memory_space<vmem>>, %arg4: memref<128x128xf32, #tpu.memory_space<vmem>>, %arg5: memref<1x128xf32, #tpu.memory_space<vmem>>, %arg6: memref<128x4xf32, #tpu.memory_space<vmem>>, %arg7: memref<1x4xf32, #tpu.memory_space<vmem>>, %arg8: memref<2x4xf32, #tpu.memory_space<vmem>>) attributes {dimension_semantics = [#tpu.dimension_semantics<parallel>], iteration_bounds = array<i64: 1>, scalar_prefetch = 0 : i64, scratch_operands = 0 : i64, tpu.core_type = #tpu.core_type<tc>, window_params = [{transform_indices = @transform_0, window_bounds = array<i64: 2, 8>}, {pipeline_mode = #tpu.pipeline_mode<synchronous>, transform_indices = @transform_1, window_bounds = array<i64: 8, 128>}, {pipeline_mode = #tpu.pipeline_mode<synchronous>, transform_indices = @transform_2, window_bounds = array<i64: 1, 128>}, {pipeline_mode = #tpu.pipeline_mode<synchronous>, transform_indices = @transform_3, window_bounds = array<i64: 128, 128>}, {pipeline_mode = #tpu.pipeline_mode<synchronous>, transform_indices = @transform_4, window_bounds = array<i64: 1, 128>}, {pipeline_mode = #tpu.pipeline_mode<synchronous>, transform_indices = @transform_5, window_bounds = array<i64: 128, 4>}, {pipeline_mode = #tpu.pipeline_mode<synchronous>, transform_indices = @transform_6, window_bounds = array<i64: 1, 4>}, {transform_indices = @transform_7, window_bounds = array<i64: 2, 4>}]} {
    %c0 = arith.constant 0 : index
    %c0_0 = arith.constant 0 : index
    %0 = vector.load %arg1[%c0, %c0_0] : memref<2x8xf32, #tpu.memory_space<vmem>>, vector<2x8xf32>
    %c0_1 = arith.constant 0 : index
    %c0_2 = arith.constant 0 : index
    %1 = vector.load %arg2[%c0_1, %c0_2] : memref<8x128xf32, #tpu.memory_space<vmem>>, vector<8x128xf32>
    %cst = arith.constant dense<0.000000e+00> : vector<2x128xf32>
    %2 = tpu.matmul %0, %1, %cst {dimension_numbers = #tpu.dot_dimension_numbers<[1], [0], [0], [1], [0, 0, 1, 1], [], []>} : vector<2x8xf32>, vector<8x128xf32>, vector<2x128xf32> -> vector<2x128xf32>
    %c0_3 = arith.constant 0 : index
    %c0_4 = arith.constant 0 : index
    %3 = vector.load %arg3[%c0_3, %c0_4] : memref<1x128xf32, #tpu.memory_space<vmem>>, vector<1x128xf32>
    %4 = vector.broadcast %3 : vector<1x128xf32> to vector<2x128xf32>
    %5 = arith.addf %2, %4 : vector<2x128xf32>
    %6 = math.tanh %5 : vector<2x128xf32>
    %c0_5 = arith.constant 0 : index
    %c0_6 = arith.constant 0 : index
    %7 = vector.load %arg4[%c0_5, %c0_6] : memref<128x128xf32, #tpu.memory_space<vmem>>, vector<128x128xf32>
    %cst_7 = arith.constant dense<0.000000e+00> : vector<2x128xf32>
    %8 = tpu.matmul %6, %7, %cst_7 {dimension_numbers = #tpu.dot_dimension_numbers<[1], [0], [0], [1], [0, 0, 1, 1], [], []>} : vector<2x128xf32>, vector<128x128xf32>, vector<2x128xf32> -> vector<2x128xf32>
    %c0_8 = arith.constant 0 : index
    %c0_9 = arith.constant 0 : index
    %9 = vector.load %arg5[%c0_8, %c0_9] : memref<1x128xf32, #tpu.memory_space<vmem>>, vector<1x128xf32>
    %10 = vector.broadcast %9 : vector<1x128xf32> to vector<2x128xf32>
    %11 = arith.addf %8, %10 : vector<2x128xf32>
    %12 = math.tanh %11 : vector<2x128xf32>
    %c0_10 = arith.constant 0 : index
    %c0_11 = arith.constant 0 : index
    %13 = vector.load %arg6[%c0_10, %c0_11] : memref<128x4xf32, #tpu.memory_space<vmem>>, vector<128x4xf32>
    %cst_12 = arith.constant dense<0.000000e+00> : vector<2x4xf32>
    %14 = tpu.matmul %12, %13, %cst_12 {dimension_numbers = #tpu.dot_dimension_numbers<[1], [0], [0], [1], [0, 0, 1, 1], [], []>} : vector<2x128xf32>, vector<128x4xf32>, vector<2x4xf32> -> vector<2x4xf32>
    %c0_13 = arith.constant 0 : index
    %c0_14 = arith.constant 0 : index
    %15 = vector.load %arg7[%c0_13, %c0_14] : memref<1x4xf32, #tpu.memory_space<vmem>>, vector<1x4xf32>
    %16 = vector.broadcast %15 : vector<1x4xf32> to vector<2x4xf32>
    %17 = arith.addf %14, %16 : vector<2x4xf32>
    %18 = math.tanh %17 : vector<2x4xf32>
    %c0_15 = arith.constant 0 : index
    %c0_16 = arith.constant 0 : index
    %19 = vector.load %arg8[%c0_15, %c0_16] : memref<2x4xf32, #tpu.memory_space<vmem>>, vector<2x4xf32>
    tpu.vector_store %arg8[%c0_15, %c0_16], %18 {strides = array<i32>} : memref<2x4xf32, #tpu.memory_space<vmem>>, vector<2x4xf32>,
    return
  }
  func.func @transform_0(%arg0: i32) -> (i32, i32) {
    %c0_i32 = arith.constant 0 : i32
    %c0_i32_0 = arith.constant 0 : i32
    return %arg0, %c0_i32 : i32, i32
  }
  func.func @transform_1(%arg0: i32) -> (i32, i32) {
    %c0_i32 = arith.constant 0 : i32
    %c0_i32_0 = arith.constant 0 : i32
    %c0_i32_1 = arith.constant 0 : i32
    return %c0_i32, %c0_i32_0 : i32, i32
  }
  func.func @transform_2(%arg0: i32) -> (i32, i32) {
    %c0_i32 = arith.constant 0 : i32
    %c0_i32_0 = arith.constant 0 : i32
    %c0_i32_1 = arith.constant 0 : i32
    return %c0_i32, %c0_i32_0 : i32, i32
  }
  func.func @transform_3(%arg0: i32) -> (i32, i32) {
    %c0_i32 = arith.constant 0 : i32
    %c0_i32_0 = arith.constant 0 : i32
    %c0_i32_1 = arith.constant 0 : i32
    return %c0_i32, %c0_i32_0 : i32, i32
  }
  func.func @transform_4(%arg0: i32) -> (i32, i32) {
    %c0_i32 = arith.constant 0 : i32
    %c0_i32_0 = arith.constant 0 : i32
    %c0_i32_1 = arith.constant 0 : i32
    return %c0_i32, %c0_i32_0 : i32, i32
  }
  func.func @transform_5(%arg0: i32) -> (i32, i32) {
    %c0_i32 = arith.constant 0 : i32
    %c0_i32_0 = arith.constant 0 : i32
    %c0_i32_1 = arith.constant 0 : i32
    return %c0_i32, %c0_i32_0 : i32, i32
  }
  func.func @transform_6(%arg0: i32) -> (i32, i32) {
    %c0_i32 = arith.constant 0 : i32
    %c0_i32_0 = arith.constant 0 : i32
    %c0_i32_1 = arith.constant 0 : i32
    return %c0_i32, %c0_i32_0 : i32, i32
  }
  func.func @transform_7(%arg0: i32) -> (i32, i32) {
    %c0_i32 = arith.constant 0 : i32
    %c0_i32_0 = arith.constant 0 : i32
    return %arg0, %c0_i32 : i32, i32
  }
}

</mosaic_0001>

<llo_original>
// kernel: ddpg_forward.1
$region0: #{ddpg_forward.1}
  #allocation0 [shape = 'u32[]', space=smem, size = 0x4, offset = 0x4, fixed_abs, tag = 'smem constant byte address 0x4 - core index']
  #allocation1 [shape = 'u32[72,128]{1,0:T(1,128)}', space=vmem, size = 0x9000, scoped, tag = 'internal scratch']
  %s0 = inlined_call_operand.hbm [shape: f32[2,8], index: 0, kind: input, shape index: {}]
  %s1 = inlined_call_operand.vmem [shape: f32[8,128], index: 1, kind: input, shape index: {}]
  %s2 = inlined_call_operand.hbm [shape: f32[1,128], index: 2, kind: input, shape index: {}]
  %s3 = inlined_call_operand.vmem [shape: f32[128,128], index: 3, kind: input, shape index: {}]
  %s4 = inlined_call_operand.hbm [shape: f32[1,128], index: 4, kind: input, shape index: {}]
  %s5 = inlined_call_operand.vmem [shape: f32[128,4], index: 5, kind: input, shape index: {}]
  %s6 = inlined_call_operand.hbm [shape: f32[1,4], index: 6, kind: input, shape index: {}]
  %s7 = inlined_call_operand.hbm [shape: f32[2,4], index: 7, kind: output, shape index: {}]
  %s8 = sld [smem:[#allocation0]]
  $region54: #{ddpg_forward.1} parent=0
    _
  %s10 = ssub.s32 1, %s8
  %s11 = scalar_select 0, %s10, %s8
  $region1: #{ddpg_forward.1} parent=0
    #allocation2 [shape = 'u8[1024]{0}', space=vmem, size = 0x400, scoped, tag = 'input window, operand 0, single buffered']
    #allocation3 [shape = 's32[1]{0}', space=sflag, size = 0x4, scoped, tag = 'scoped memory for ddpg_forward.1']
    #allocation4 [shape = 's32[1]{0}', space=sflag, size = 0x4, scoped, tag = 'scoped memory for ddpg_forward.1']
    #allocation5 [shape = 'u8[512]{0}', space=vmem, size = 0x400, scoped, tag = 'input window, operand 2, single buffered']
    #allocation6 [shape = 's32[1]{0}', space=sflag, size = 0x4, scoped, tag = 'scoped memory for ddpg_forward.1']
    #allocation7 [shape = 'u8[512]{0}', space=vmem, size = 0x400, scoped, tag = 'input window, operand 4, single buffered']
    #allocation8 [shape = 'u8[512]{0}', space=vmem, size = 0x400, scoped, tag = 'input window, operand 6, single buffered']
    #allocation9 [shape = 's32[1]{0}', space=sflag, size = 0x4, scoped, tag = 'scoped memory for ddpg_forward.1']
    #allocation10 [shape = 'u8[1024]{0}', space=vmem, size = 0x400, scoped, tag = 'output window, operand 0, single buffered']
    %12 = vsyncpa [#allocation3], 0
    %13 = vsyncpa [#allocation6], 0
    %14 = vsyncpa [#allocation9], 0
    %15 = vsyncpa [#allocation4], 0
    // Predicated region
    $region2: #{ddpg_forward.1} parent=1 // pred_check
      _
    $region3: #{ddpg_forward.1} parent=1 // pred_check_branch
      %17 = sbr.rel (0) target = $region5
    $region4: #{ddpg_forward.1} parent=1 // pred_region
      %19 = vsyncadd [#allocation3], 0
      %s21 = sshll.u32 %s0, 4
      %s22 = int_to_ptr.hbm [resolvable:$true] %s21
      %s23 = sshll.u32 [#allocation2], 4
      %s24 = int_to_ptr.vmem [resolvable:$true] %s23
      %26 = dma.hbm_to_vmem [thread:$0]  %s22, 32, %s24, [#allocation3]
    $region5: #{ddpg_forward.1} parent=1 // pred_fallthru
      _
    // Predicated region
    $region6: #{ddpg_forward.1} parent=1 // pred_check
      _
    $region7: #{ddpg_forward.1} parent=1 // pred_check_branch
      %28 = sbr.rel (0) target = $region9
    $region8: #{ddpg_forward.1} parent=1 // pred_region
      _
    $region9: #{ddpg_forward.1} parent=1 // pred_fallthru
      _
    // Predicated region
    $region10: #{ddpg_forward.1} parent=1 // pred_check
      _
    $region11: #{ddpg_forward.1} parent=1 // pred_check_branch
      %30 = sbr.rel (0) target = $region13
    $region12: #{ddpg_forward.1} parent=1 // pred_region
      %32 = vsyncadd [#allocation6], 0
      %s34 = sshll.u32 %s2, 4
      %s35 = int_to_ptr.hbm [resolvable:$true] %s34
      %s36 = sshll.u32 [#allocation5], 4
      %s37 = int_to_ptr.vmem [resolvable:$true] %s36
      %39 = dma.hbm_to_vmem [thread:$0]  %s35, 16, %s37, [#allocation6]
    $region13: #{ddpg_forward.1} parent=1 // pred_fallthru
      _
    // Predicated region
    $region14: #{ddpg_forward.1} parent=1 // pred_check
      _
    $region15: #{ddpg_forward.1} parent=1 // pred_check_branch
      %41 = sbr.rel (0) target = $region17
    $region16: #{ddpg_forward.1} parent=1 // pred_region
      _
    $region17: #{ddpg_forward.1} parent=1 // pred_fallthru
      _
    // Predicated region
    $region18: #{ddpg_forward.1} parent=1 // pred_check
      _
    $region19: #{ddpg_forward.1} parent=1 // pred_check_branch
      %43 = sbr.rel (0) target = $region21
    $region20: #{ddpg_forward.1} parent=1 // pred_region
      %45 = vsyncadd [#allocation6], 0
      %s47 = sshll.u32 %s4, 4
      %s48 = int_to_ptr.hbm [resolvable:$true] %s47
      %s49 = sshll.u32 [#allocation7], 4
      %s50 = int_to_ptr.vmem [resolvable:$true] %s49
      %52 = dma.hbm_to_vmem [thread:$0]  %s48, 16, %s50, [#allocation6]
    $region21: #{ddpg_forward.1} parent=1 // pred_fallthru
      _
    // Predicated region
    $region22: #{ddpg_forward.1} parent=1 // pred_check
      _
    $region23: #{ddpg_forward.1} parent=1 // pred_check_branch
      %54 = sbr.rel (0) target = $region25
    $region24: #{ddpg_forward.1} parent=1 // pred_region
      _
    $region25: #{ddpg_forward.1} parent=1 // pred_fallthru
      _
    // Predicated region
    $region26: #{ddpg_forward.1} parent=1 // pred_check
      _
    $region27: #{ddpg_forward.1} parent=1 // pred_check_branch
      %56 = sbr.rel (0) target = $region29
    $region28: #{ddpg_forward.1} parent=1 // pred_region
      %58 = vsyncadd [#allocation9], 0
      %s60 = sshll.u32 %s6, 4
      %s61 = int_to_ptr.hbm [resolvable:$true] %s60
      %s62 = sshll.u32 [#allocation8], 4
      %s63 = int_to_ptr.vmem [resolvable:$true] %s62
      %65 = dma.hbm_to_vmem [thread:$0]  %s61, 16, %s63, [#allocation9]
    $region29: #{ddpg_forward.1} parent=1 // pred_fallthru
      _
    // Predicated region
    $region30: #{ddpg_forward.1} parent=1 // pred_check
      _
    $region31: #{ddpg_forward.1} parent=1 // pred_check_branch
      %67 = sbr.rel (0) target = $region33
    $region32: #{ddpg_forward.1} parent=1 // pred_region
      %69 = dma.done [#allocation3], 32
    $region33: #{ddpg_forward.1} parent=1 // pred_fallthru
      _
    // Predicated region
    $region34: #{ddpg_forward.1} parent=1 // pred_check
      _
    $region35: #{ddpg_forward.1} parent=1 // pred_check_branch
      %71 = sbr.rel (0) target = $region37
    $region36: #{ddpg_forward.1} parent=1 // pred_region
      %73 = dma.done [#allocation6], 16
    $region37: #{ddpg_forward.1} parent=1 // pred_fallthru
      _
    // Predicated region
    $region38: #{ddpg_forward.1} parent=1 // pred_check
      _
    $region39: #{ddpg_forward.1} parent=1 // pred_check_branch
      %75 = sbr.rel (0) target = $region41
    $region40: #{ddpg_forward.1} parent=1 // pred_region
      %77 = dma.done [#allocation6], 16
    $region41: #{ddpg_forward.1} parent=1 // pred_fallthru
      _
    // Predicated region
    $region42: #{ddpg_forward.1} parent=1 // pred_check
      _
    $region43: #{ddpg_forward.1} parent=1 // pred_check_branch
      %79 = sbr.rel (0) target = $region45
    $region44: #{ddpg_forward.1} parent=1 // pred_region
      %81 = dma.done [#allocation9], 16
    $region45: #{ddpg_forward.1} parent=1 // pred_fallthru
      _
    %v82 = vld [vmem:[#allocation2] sm:$0x3]
    %v83 = vld [vmem:[%s1] sm:$0xff]
    %v84 = vld [vmem:[#allocation5] sm:$0x1]
    %v86 = vperm.slane %v84, 0
    %vm88 = vcmask 64512
    %v90 = vsel %vm88, %v82, 0
    %92 = vmatpush.msra.mxu0 0.0
    %93 = vmatpush.msra.mxu0 0.0
    %94 = vmatpush.msra.mxu0 0.0
    %95 = vmatpush.msra.mxu0 0.0
    %96 = vmatpush.msra.mxu0 0.0
    %97 = vmatpush.msra.mxu0 0.0
    %98 = vmatpush.msra.mxu0 0.0
    %99 = vmatpush.msra.mxu0 0.0
    %100 = vmatpush.msra.mxu0 0.0
    %101 = vmatpush.msra.mxu0 0.0
    %102 = vmatpush.msra.mxu0 0.0
    %103 = vmatpush.msra.mxu0 0.0
    %104 = vmatpush.msra.mxu0 0.0
    %105 = vmatpush.msra.mxu0 0.0
    %106 = vmatpush.msra.mxu0 0.0
    %107 = vmatpush.msra.mxu0 %v83
    %108 = vmatmul.f32.gmra.mxu0 %v90
    %v109 = vpop.f32.mrf.mxu0
    %v110 = vadd.f32 %v86, %v109
    %111 = vdwg.mxu0
    %v112 = vtanh.pop %v110
    %v113 = vld [vmem:[%s3] sm:$0xff]
    %v114 = vld [vmem:[%s3 + $0x8] sm:$0xff]
    %v115 = vld [vmem:[%s3 + $0x10] sm:$0xff]
    %v116 = vld [vmem:[%s3 + $0x18] sm:$0xff]
    %v117 = vld [vmem:[%s3 + $0x20] sm:$0xff]
    %v118 = vld [vmem:[%s3 + $0x28] sm:$0xff]
    %v119 = vld [vmem:[%s3 + $0x30] sm:$0xff]
    %v120 = vld [vmem:[%s3 + $0x38] sm:$0xff]
    %v121 = vld [vmem:[%s3 + $0x40] sm:$0xff]
    %v122 = vld [vmem:[%s3 + $0x48] sm:$0xff]
    %v123 = vld [vmem:[%s3 + $0x50] sm:$0xff]
    %v124 = vld [vmem:[%s3 + $0x58] sm:$0xff]
    %v125 = vld [vmem:[%s3 + $0x60] sm:$0xff]
    %v126 = vld [vmem:[%s3 + $0x68] sm:$0xff]
    %v127 = vld [vmem:[%s3 + $0x70] sm:$0xff]
    %v128 = vld [vmem:[%s3 + $0x78] sm:$0xff]
    %v129 = vld [vmem:[#allocation7] sm:$0x1]
    %v131 = vperm.slane %v129, 0
    %133 = vmatpush.msra.mxu0 %v128
    %134 = vmatpush.msra.mxu0 %v127
    %135 = vmatpush.msra.mxu0 %v126
    %136 = vmatpush.msra.mxu0 %v125
    %137 = vmatpush.msra.mxu0 %v124
    %138 = vmatpush.msra.mxu0 %v123
    %139 = vmatpush.msra.mxu0 %v122
    %140 = vmatpush.msra.mxu0 %v121
    %141 = vmatpush.msra.mxu0 %v120
    %142 = vmatpush.msra.mxu0 %v119
    %143 = vmatpush.msra.mxu0 %v118
    %144 = vmatpush.msra.mxu0 %v117
    %145 = vmatpush.msra.mxu0 %v116
    %146 = vmatpush.msra.mxu0 %v115
    %147 = vmatpush.msra.mxu0 %v114
    %148 = vmatpush.msra.mxu0 %v113
    %149 = vmatmul.f32.gmra.mxu0 %v112
    %v150 = vpop.f32.mrf.mxu0
    %v151 = vadd.f32 %v131, %v150
    %152 = vdwg.mxu0
    %v153 = vtanh.pop %v151
    %v154 = vld [vmem:[%s5] sm:$0xff]
    %v155 = vld [vmem:[%s5 + $0x8] sm:$0xff]
    %v156 = vld [vmem:[%s5 + $0x10] sm:$0xff]
    %v157 = vld [vmem:[%s5 + $0x18] sm:$0xff]
    %v158 = vld [vmem:[%s5 + $0x20] sm:$0xff]
    %v159 = vld [vmem:[%s5 + $0x28] sm:$0xff]
    %v160 = vld [vmem:[%s5 + $0x30] sm:$0xff]
    %v161 = vld [vmem:[%s5 + $0x38] sm:$0xff]
    %v162 = vld [vmem:[%s5 + $0x40] sm:$0xff]
    %v163 = vld [vmem:[%s5 + $0x48] sm:$0xff]
    %v164 = vld [vmem:[%s5 + $0x50] sm:$0xff]
    %v165 = vld [vmem:[%s5 + $0x58] sm:$0xff]
    %v166 = vld [vmem:[%s5 + $0x60] sm:$0xff]
    %v167 = vld [vmem:[%s5 + $0x68] sm:$0xff]
    %v168 = vld [vmem:[%s5 + $0x70] sm:$0xff]
    %v169 = vld [vmem:[%s5 + $0x78] sm:$0xff]
    %v170 = vld [vmem:[#allocation8] sm:$0x1]
    %v172 = vperm.slane %v170, 0
    %174 = vmatpush.msra.mxu0 %v169
    %175 = vmatpush.msra.mxu0 %v168
    %176 = vmatpush.msra.mxu0 %v167
    %177 = vmatpush.msra.mxu0 %v166
    %178 = vmatpush.msra.mxu0 %v165
    %179 = vmatpush.msra.mxu0 %v164
    %180 = vmatpush.msra.mxu0 %v163
    %181 = vmatpush.msra.mxu0 %v162
    %182 = vmatpush.msra.mxu0 %v161
    %183 = vmatpush.msra.mxu0 %v160
    %184 = vmatpush.msra.mxu0 %v159
    %185 = vmatpush.msra.mxu0 %v158
    %186 = vmatpush.msra.mxu0 %v157
    %187 = vmatpush.msra.mxu0 %v156
    %188 = vmatpush.msra.mxu0 %v155
    %189 = vmatpush.msra.mxu0 %v154
    %190 = vmatmul.f32.gmra.mxu0 %v153
    %v191 = vpop.f32.mrf.mxu0
    %v192 = vadd.f32 %v172, %v191
    %193 = vdwg.mxu0
    %v194 = vtanh.pop %v192
    %vm195 = vcmask 25600
    %196 = vst.msk [vmem:[#allocation10] sm:$0x3] %vm195, %v194
    // Predicated region
    $region46: #{ddpg_forward.1} parent=1 // pred_check
      _
    $region47: #{ddpg_forward.1} parent=1 // pred_check_branch
      %198 = sbr.rel (0) target = $region49
    $region48: #{ddpg_forward.1} parent=1 // pred_region
      %200 = vsyncadd [#allocation4], 0
      %s202 = sshll.u32 [#allocation10], 4
      %s203 = int_to_ptr.vmem [resolvable:$true] %s202
      %s204 = sshll.u32 %s7, 4
      %s205 = int_to_ptr.hbm [resolvable:$true] %s204
      %207 = dma.vmem_to_hbm [thread:$0]  %s203, 32, %s205, [#allocation4]
    $region49: #{ddpg_forward.1} parent=1 // pred_fallthru
      _
    // Predicated region
    $region50: #{ddpg_forward.1} parent=1 // pred_check
      _
    $region51: #{ddpg_forward.1} parent=1 // pred_check_branch
      %209 = sbr.rel (0) target = $region53
    $region52: #{ddpg_forward.1} parent=1 // pred_region
      %211 = dma.done [#allocation4], 32
    $region53: #{ddpg_forward.1} parent=1 // pred_fallthru
      _
    %212 = vsyncpa [#allocation3], 1
    %213 = vsyncpa [#allocation6], 1
    %214 = vsyncpa [#allocation9], 1
    %215 = vsyncpa [#allocation4], 1

</llo_original>
